<compile_context>
chip_gen: v7x
topology: tpu7x:2x2x1
jax: 0.10.0
libtpu: 0.0.40
codegen_flags: <defaults>
</compile_context>

<pallas_src>
import jax
import jax.numpy as jnp
from jax import lax
from jax.experimental import pallas as pl
from jax.experimental.pallas import tpu as pltpu


def full2net_kernel(x_ref, w1_ref, b1_ref, w2_ref, b2_ref, w3_ref, b3_ref, o_ref):
    x = x_ref[...]          # (bt, 2)   native layout, batch on sublanes
    w1 = w1_ref[...]        # (hid, 2)  PyTorch [out, in] layout

    # Layer 1 (in=2): NT dot_general == w1 @ x^T -> (hid, bt).  Puts the batch
    # on lanes with no explicit transpose op and rides the otherwise-idle MXU.
    h1 = jnp.tanh(
        lax.dot_general(w1, x, (((1,), (1,)), ((), ())),
                        preferred_element_type=jnp.float32)
        + b1_ref[...]
    )                                                        # (hid, bt)

    # Layer 2 (hid x hid): the only real matmul -> MXU, f32 accumulate.
    h2 = jnp.tanh(
        jnp.dot(w2_ref[...], h1, preferred_element_type=jnp.float32) + b2_ref[...]
    )                                                        # (hid, bt)

    # Layer 3 (out=1): N=1 matmul -> elementwise multiply + sublane reduce.
    logits = jnp.sum(w3_ref[...] * h2, axis=0, keepdims=True) + b3_ref[0, 0]  # (1, bt)

    # sigmoid(z) == 0.5 * (tanh(0.5 * z) + 1): single EUP transcendental.
    o_ref[...] = 0.5 * (jnp.tanh(0.5 * logits) + 1.0)


def full2net_forward(x, params, *, batch_tile=None):
    """x: [N, 2] float32. params in PyTorch layout (w: [out, in], b: [out]).

    Returns [N, 1] float32.
    """
    n, in_dim = x.shape
    assert in_dim == 2 and n >= 1

    hid = params["w1"].shape[0]

    if batch_tile is None:
        # ~0.35us fixed cost per grid step -> use big tiles, but:
        #  (a) keep >= 2 blocks when possible so v7x's two TensorCores both run,
        #  (b) keep the (hid, batch_tile) f32 activation temporaries well inside
        #      the scoped-VMEM defaults on every generation (v5e 16 MiB ... v7x 32 MiB).
        vmem_cap = max(128, ((1 << 20) // max(hid, 1)) // 128 * 128)
        two_blocks = max(128, pl.next_power_of_2(pl.cdiv(n, 2)))
        batch_tile = min(4096, vmem_cap, two_blocks)
    assert batch_tile % 128 == 0, "batch_tile must be a multiple of 128 (lane width)"

    n_blocks = pl.cdiv(n, batch_tile)

    x = x.astype(jnp.float32)                                 # native (N, 2), no pad/transpose
    w1 = params["w1"].astype(jnp.float32)                     # (hid, 2)
    b1 = params["b1"].reshape(hid, 1).astype(jnp.float32)     # (hid, 1)
    w2 = params["w2"].astype(jnp.float32)                     # (hid, hid)
    b2 = params["b2"].reshape(hid, 1).astype(jnp.float32)     # (hid, 1)
    w3 = params["w3"].reshape(hid, 1).astype(jnp.float32)     # (hid, 1)
    b3 = params["b3"].reshape(1, 1).astype(jnp.float32)       # (1, 1) -> SMEM scalar

    cost = pl.CostEstimate(
        flops=2 * n * hid * (hid + 3),
        transcendentals=n * (2 * hid + 1),
        bytes_accessed=12 * n + 4 * (hid * hid + 5 * hid + 1),
    )

    out_row = pl.pallas_call(
        full2net_kernel,
        out_shape=jax.ShapeDtypeStruct((1, n), jnp.float32),
        grid_spec=pltpu.PrefetchScalarGridSpec(
            num_scalar_prefetch=0,
            grid=(n_blocks,),
            in_specs=[
                pl.BlockSpec((batch_tile, 2), lambda i: (i, 0)),     # x, native layout
                pl.BlockSpec((hid, 2), lambda i: (0, 0)),            # w1
                pl.BlockSpec((hid, 1), lambda i: (0, 0)),            # b1
                pl.BlockSpec((hid, hid), lambda i: (0, 0)),          # w2
                pl.BlockSpec((hid, 1), lambda i: (0, 0)),            # b2
                pl.BlockSpec((hid, 1), lambda i: (0, 0)),            # w3 (as column)
                pl.BlockSpec(memory_space=pltpu.MemorySpace.SMEM),   # b3 scalar
            ],
            out_specs=pl.BlockSpec((1, batch_tile), lambda i: (0, i)),  # lane-dense output
        ),
        compiler_params=pltpu.CompilerParams(
            dimension_semantics=("parallel",),   # batch tiles shard across TCs on v7x
        ),
        cost_estimate=cost,
    )(x, w1, b1, w2, b2, w3, b3)

    # (1, N) -> (N, 1) is a free row-major bitcast; no padding to slice off.
    return out_row.reshape(n, 1)


def init_params(key, hid):
    """PyTorch-layout init mimicking nn.Linear's U(-1/sqrt(fan_in), 1/sqrt(fan_in))."""
    ks = jax.random.split(key, 6)

    def lin(kw, kb, fan_in, fan_out):
        bound = 1.0 / jnp.sqrt(jnp.float32(fan_in))
        w = jax.random.uniform(kw, (fan_out, fan_in), jnp.float32, -bound, bound)
        b = jax.random.uniform(kb, (fan_out,), jnp.float32, -bound, bound)
        return w, b

    w1, b1 = lin(ks[0], ks[1], 2, hid)
    w2, b2 = lin(ks[2], ks[3], hid, hid)
    w3, b3 = lin(ks[4], ks[5], hid, 1)
    return {"w1": w1, "b1": b1, "w2": w2, "b2": b2, "w3": w3, "b3": b3}


def full2net_ref(x, p):
    h1 = jnp.tanh(x @ p["w1"].T + p["b1"])
    h2 = jnp.tanh(h1 @ p["w2"].T + p["b2"])
    return jax.nn.sigmoid(h2 @ p["w3"].T + p["b3"])


if __name__ == "__main__":
    key = jax.random.PRNGKey(0)
    k_x, k_p = jax.random.split(key)

    hid = 32
    batch = 1000  # not a multiple of the tile -> exercises ragged tail blocks
    x = jax.random.normal(k_x, (batch, 2), dtype=jnp.float32)
    params = init_params(k_p, hid)

    ref = full2net_ref(x, params)

    # Default heuristic tile (512 here -> 2 grid blocks, ragged second block).
    out = jax.block_until_ready(full2net_forward(x, params))
    assert out.shape == (batch, 1)
    assert jnp.allclose(out, ref, atol=1e-5, rtol=1e-5)

    # Explicit smaller tile -> 4 grid steps, still ragged.
    out2 = jax.block_until_ready(full2net_forward(x, params, batch_tile=256))
    assert jnp.allclose(out2, ref, atol=1e-5, rtol=1e-5)

    print("KERNEL_OK")
</pallas_src>

<mosaic_0001>
module attributes {stable_mosaic.version = 11 : i64} {
  func.func @full2net_kernel(%arg0: i32, %arg1: memref<512x2xf32, #tpu.memory_space<vmem>>, %arg2: memref<32x2xf32, #tpu.memory_space<vmem>>, %arg3: memref<32x1xf32, #tpu.memory_space<vmem>>, %arg4: memref<32x32xf32, #tpu.memory_space<vmem>>, %arg5: memref<32x1xf32, #tpu.memory_space<vmem>>, %arg6: memref<32x1xf32, #tpu.memory_space<vmem>>, %arg7: memref<1x1xf32, #tpu.memory_space<smem>>, %arg8: memref<1x512xf32, #tpu.memory_space<vmem>>) attributes {dimension_semantics = [#tpu.dimension_semantics<parallel>], iteration_bounds = array<i64: 2>, scalar_prefetch = 0 : i64, scratch_operands = 0 : i64, tpu.core_type = #tpu.core_type<tc>, window_params = [{transform_indices = @transform_0, window_bounds = array<i64: 512, 2>}, {pipeline_mode = #tpu.pipeline_mode<synchronous>, transform_indices = @transform_1, window_bounds = array<i64: 32, 2>}, {pipeline_mode = #tpu.pipeline_mode<synchronous>, transform_indices = @transform_2, window_bounds = array<i64: 32, 1>}, {pipeline_mode = #tpu.pipeline_mode<synchronous>, transform_indices = @transform_3, window_bounds = array<i64: 32, 32>}, {pipeline_mode = #tpu.pipeline_mode<synchronous>, transform_indices = @transform_4, window_bounds = array<i64: 32, 1>}, {pipeline_mode = #tpu.pipeline_mode<synchronous>, transform_indices = @transform_5, window_bounds = array<i64: 32, 1>}, {transform_indices = @transform_6, window_bounds = array<i64: 1, 1>}, {transform_indices = @transform_7, window_bounds = array<i64: 1, 512>}]} {
    %c0 = arith.constant 0 : index
    %c0_0 = arith.constant 0 : index
    %0 = vector.load %arg1[%c0, %c0_0] : memref<512x2xf32, #tpu.memory_space<vmem>>, vector<512x2xf32>
    %c0_1 = arith.constant 0 : index
    %c0_2 = arith.constant 0 : index
    %1 = vector.load %arg2[%c0_1, %c0_2] : memref<32x2xf32, #tpu.memory_space<vmem>>, vector<32x2xf32>
    %cst = arith.constant dense<0.000000e+00> : vector<32x512xf32>
    %2 = tpu.matmul %1, %0, %cst {dimension_numbers = #tpu.dot_dimension_numbers<[1], [1], [0], [0], [0, 0, 1, 0], [], []>} : vector<32x2xf32>, vector<512x2xf32>, vector<32x512xf32> -> vector<32x512xf32>
    %c0_3 = arith.constant 0 : index
    %c0_4 = arith.constant 0 : index
    %3 = vector.load %arg3[%c0_3, %c0_4] : memref<32x1xf32, #tpu.memory_space<vmem>>, vector<32x1xf32>
    %4 = vector.broadcast %3 : vector<32x1xf32> to vector<32x512xf32>
    %5 = arith.addf %2, %4 : vector<32x512xf32>
    %6 = math.tanh %5 : vector<32x512xf32>
    %c0_5 = arith.constant 0 : index
    %c0_6 = arith.constant 0 : index
    %7 = vector.load %arg4[%c0_5, %c0_6] : memref<32x32xf32, #tpu.memory_space<vmem>>, vector<32x32xf32>
    %cst_7 = arith.constant dense<0.000000e+00> : vector<32x512xf32>
    %8 = tpu.matmul %7, %6, %cst_7 {dimension_numbers = #tpu.dot_dimension_numbers<[1], [0], [0], [1], [0, 0, 1, 1], [], []>} : vector<32x32xf32>, vector<32x512xf32>, vector<32x512xf32> -> vector<32x512xf32>
    %c0_8 = arith.constant 0 : index
    %c0_9 = arith.constant 0 : index
    %9 = vector.load %arg5[%c0_8, %c0_9] : memref<32x1xf32, #tpu.memory_space<vmem>>, vector<32x1xf32>
    %10 = vector.broadcast %9 : vector<32x1xf32> to vector<32x512xf32>
    %11 = arith.addf %8, %10 : vector<32x512xf32>
    %12 = math.tanh %11 : vector<32x512xf32>
    %c0_10 = arith.constant 0 : index
    %c0_11 = arith.constant 0 : index
    %13 = vector.load %arg6[%c0_10, %c0_11] : memref<32x1xf32, #tpu.memory_space<vmem>>, vector<32x1xf32>
    %14 = vector.broadcast %13 : vector<32x1xf32> to vector<32x512xf32>
    %15 = arith.mulf %14, %12 : vector<32x512xf32>
    %cst_12 = arith.constant dense<0.000000e+00> : vector<512xf32>
    %16 = vector.multi_reduction <add>, %15, %cst_12 [0] : vector<32x512xf32> to vector<512xf32>
    %17 = vector.shape_cast %16 : vector<512xf32> to vector<1x512xf32>
    %c0_13 = arith.constant 0 : index
    %c0_14 = arith.constant 0 : index
    %18 = memref.load %arg7[%c0_13, %c0_14] : memref<1x1xf32, #tpu.memory_space<smem>>
    %19 = vector.broadcast %18 : f32 to vector<1x512xf32>
    %20 = arith.addf %17, %19 : vector<1x512xf32>
    %cst_15 = arith.constant 5.000000e-01 : f32
    %21 = vector.broadcast %cst_15 : f32 to vector<1x512xf32>
    %22 = arith.mulf %21, %20 : vector<1x512xf32>
    %23 = math.tanh %22 : vector<1x512xf32>
    %cst_16 = arith.constant 1.000000e+00 : f32
    %24 = vector.broadcast %cst_16 : f32 to vector<1x512xf32>
    %25 = arith.addf %23, %24 : vector<1x512xf32>
    %cst_17 = arith.constant 5.000000e-01 : f32
    %26 = vector.broadcast %cst_17 : f32 to vector<1x512xf32>
    %27 = arith.mulf %26, %25 : vector<1x512xf32>
    %c0_18 = arith.constant 0 : index
    %c0_19 = arith.constant 0 : index
    %28 = vector.load %arg8[%c0_18, %c0_19] : memref<1x512xf32, #tpu.memory_space<vmem>>, vector<1x512xf32>
    tpu.vector_store %arg8[%c0_18, %c0_19], %27 {strides = array<i32>} : memref<1x512xf32, #tpu.memory_space<vmem>>, vector<1x512xf32>,
    return
  }
  func.func @transform_0(%arg0: i32) -> (i32, i32) {
    %c0_i32 = arith.constant 0 : i32
    %c0_i32_0 = arith.constant 0 : i32
    return %arg0, %c0_i32 : i32, i32
  }
  func.func @transform_1(%arg0: i32) -> (i32, i32) {
    %c0_i32 = arith.constant 0 : i32
    %c0_i32_0 = arith.constant 0 : i32
    %c0_i32_1 = arith.constant 0 : i32
    return %c0_i32, %c0_i32_0 : i32, i32
  }
  func.func @transform_2(%arg0: i32) -> (i32, i32) {
    %c0_i32 = arith.constant 0 : i32
    %c0_i32_0 = arith.constant 0 : i32
    %c0_i32_1 = arith.constant 0 : i32
    return %c0_i32, %c0_i32_0 : i32, i32
  }
  func.func @transform_3(%arg0: i32) -> (i32, i32) {
    %c0_i32 = arith.constant 0 : i32
    %c0_i32_0 = arith.constant 0 : i32
    %c0_i32_1 = arith.constant 0 : i32
    return %c0_i32, %c0_i32_0 : i32, i32
  }
  func.func @transform_4(%arg0: i32) -> (i32, i32) {
    %c0_i32 = arith.constant 0 : i32
    %c0_i32_0 = arith.constant 0 : i32
    %c0_i32_1 = arith.constant 0 : i32
    return %c0_i32, %c0_i32_0 : i32, i32
  }
  func.func @transform_5(%arg0: i32) -> (i32, i32) {
    %c0_i32 = arith.constant 0 : i32
    %c0_i32_0 = arith.constant 0 : i32
    %c0_i32_1 = arith.constant 0 : i32
    return %c0_i32, %c0_i32_0 : i32, i32
  }
  func.func @transform_6(%arg0: i32) -> (i32, i32) {
    %c0_i32 = arith.constant 0 : i32
    %c0_i32_0 = arith.constant 0 : i32
    %c0_i32_1 = arith.constant 0 : i32
    return %c0_i32, %c0_i32_0 : i32, i32
  }
  func.func @transform_7(%arg0: i32) -> (i32, i32) {
    %c0_i32 = arith.constant 0 : i32
    %c0_i32_0 = arith.constant 0 : i32
    return %c0_i32, %arg0 : i32, i32
  }
}

</mosaic_0001>

<llo_original>
// kernel: tpu_custom_call.1
$region0: #{tpu_custom_call.1}
  #allocation0 [shape = 'u32[]', space=smem, size = 0x4, offset = 0x4, fixed_abs, tag = 'smem constant byte address 0x4 - core index']
  #allocation1 [shape = 'u32[144,128]{1,0:T(1,128)}', space=vmem, size = 0x12000, scoped, tag = 'internal scratch']
  #allocation2 [shape = 'f32[1,1]{1,0:T(1,128)S(6)}', space=smem, size = 0x200, scoped, tag = 'scoped memory for tpu_custom_call.1']
  %s0 = inlined_call_operand.vmem [shape: f32[1000,2], index: 0, kind: input, shape index: {}]
  %s1 = inlined_call_operand.vmem [shape: f32[32,2], index: 1, kind: input, shape index: {}]
  %s2 = inlined_call_operand.vmem [shape: f32[32,1], index: 2, kind: input, shape index: {}]
  %s3 = inlined_call_operand.vmem [shape: f32[32,32], index: 3, kind: input, shape index: {}]
  %s4 = inlined_call_operand.vmem [shape: f32[32,1], index: 4, kind: input, shape index: {}]
  %s5 = inlined_call_operand.vmem [shape: f32[32,1], index: 5, kind: input, shape index: {}]
  %s6 = inlined_call_operand.<no memory space> [shape: f32[1,1], index: 6, kind: input, shape index: {}]
  %s7 = inlined_call_operand.hbm [shape: f32[1,1000], index: 7, kind: output, shape index: {}]
  %s8 = sld [smem:[#allocation0]]
  $region61: #{tpu_custom_call.1} parent=0
    _
  %s10 = ssub.s32 1, %s8
  %s11 = scalar_select 0, %s10, %s8
  %12 = sst [smem:[#allocation2]] %s6
  $region1: #{tpu_custom_call.1} parent=0
    #allocation3 [shape = 'u8[4096]{0}', space=vmem, size = 0x1000, scoped, tag = 'output window, operand 0']
    #allocation4 [shape = 's32[2]{0}', space=sflag, size = 0x8, scoped, tag = 'scoped memory for tpu_custom_call.1']
    %13 = vsyncpa [#allocation4], 0
    %s14 = scalar_lea.sflag [#allocation4], 1
    %15 = vsyncpa %s14, 0
    loop: start=0, step=1, limit=4
    $region2: #{tpu_custom_call.1} parent=1 // loop_pre_header
      _
    $region3: #{tpu_custom_call.1} parent=1 // loop_header
      %s17 = sphi 0, %s21
      %p18 = scmp.ge.s32.totalorder %s17, 4
      %s27 = sphi 0, %s29
      %s30 = sphi 0, %s27
      %s31 = sphi 0, %s30
      %s47 = sphi 0, %s31
      %s51 = sphi 0, %s51
      %s53 = sphi 0, %s51
      %s54 = sphi 0, %s53
      %s68 = sphi 0, %s54
      %s72 = sphi 0, %s72
      %s74 = sphi 0, %s72
      %s75 = sphi 0, %s74
      %s89 = sphi 0, %s75
      %s93 = sphi 0, %s93
      %s95 = sphi 0, %s93
      %s96 = sphi 0, %s95
      %s110 = sphi 0, %s96
      %s114 = sphi 0, %s114
      %s116 = sphi 0, %s114
      %s117 = sphi 0, %s116
      %s131 = sphi 0, %s117
      %s135 = sphi 0, %s135
      %s137 = sphi 0, %s135
      %s138 = sphi 0, %s137
      %s152 = sphi 0, %s138
      %s156 = sphi 0, %s156
      %s158 = sphi 0, %s156
      %s159 = sphi 0, %s158
      %s173 = sphi 0, %s159
      %s179 = sphi 0, %s181
      %s182 = sphi 0, %s179
      %s183 = sphi 0, %s182
      %s199 = sphi 0, %s183
    $region4: #{tpu_custom_call.1} parent=1 // loop_header_branch
      %20 = sbr.rel (%p18) target = $region8
    $region5: #{tpu_custom_call.1} parent=1 // loop_body
      %s22 = ssub.s32 %s17, 1
      %s23 = ssub.s32 %s17, 2
      %s24 = sadd.s32 %s17, 1
      %s25 = ssub.s32 %s17, %s24
      %p26 = scmp.eq.s32.totalorder %s25, 0
      %s28 = sadd.s32 %s27, 1
      %s29 = scalar_select %p26, %s27, %s28
      %p32 = pneg %p26
      %p33 = scmp.eq.s32.totalorder %s17, 1
      %p34 = por %p32, %p33
      %p35 = scmp.ne.s32.totalorder %s27, %s30
      %p36 = scmp.eq.s32.totalorder %s17, 0
      %p37 = por %p35, %p36
      %p38 = scmp.ne.s32.totalorder %s27, %s30
      %p39 = scmp.eq.s32.totalorder %s22, 1
      %p40 = por %p38, %p39
      %p41 = scmp.ne.s32.totalorder %s30, %s31
      %p42 = scmp.eq.s32.totalorder %s22, 0
      %p43 = por %p41, %p42
      %p44 = scmp.ne.s32.totalorder %s30, %s31
      %p45 = scmp.eq.s32.totalorder %s23, 1
      %p46 = por %p44, %p45
      %p48 = scmp.ne.s32.totalorder %s31, %s47
      %p49 = scmp.eq.s32.totalorder %s23, 0
      %p50 = por %p48, %p49
      %s52 = sadd.s32 %s51, 1
      %p55 = scmp.eq.s32.totalorder %s17, 1
      %p56 = scmp.ne.s32.totalorder %s51, %s53
      %p57 = scmp.eq.s32.totalorder %s17, 0
      %p58 = por %p56, %p57
      %p59 = scmp.ne.s32.totalorder %s51, %s53
      %p60 = scmp.eq.s32.totalorder %s22, 1
      %p61 = por %p59, %p60
      %p62 = scmp.ne.s32.totalorder %s53, %s54
      %p63 = scmp.eq.s32.totalorder %s22, 0
      %p64 = por %p62, %p63
      %p65 = scmp.ne.s32.totalorder %s53, %s54
      %p66 = scmp.eq.s32.totalorder %s23, 1
      %p67 = por %p65, %p66
      %p69 = scmp.ne.s32.totalorder %s54, %s68
      %p70 = scmp.eq.s32.totalorder %s23, 0
      %p71 = por %p69, %p70
      %s73 = sadd.s32 %s72, 1
      %p76 = scmp.eq.s32.totalorder %s17, 1
      %p77 = scmp.ne.s32.totalorder %s72, %s74
      %p78 = scmp.eq.s32.totalorder %s17, 0
      %p79 = por %p77, %p78
      %p80 = scmp.ne.s32.totalorder %s72, %s74
      %p81 = scmp.eq.s32.totalorder %s22, 1
      %p82 = por %p80, %p81
      %p83 = scmp.ne.s32.totalorder %s74, %s75
      %p84 = scmp.eq.s32.totalorder %s22, 0
      %p85 = por %p83, %p84
      %p86 = scmp.ne.s32.totalorder %s74, %s75
      %p87 = scmp.eq.s32.totalorder %s23, 1
      %p88 = por %p86, %p87
      %p90 = scmp.ne.s32.totalorder %s75, %s89
      %p91 = scmp.eq.s32.totalorder %s23, 0
      %p92 = por %p90, %p91
      %s94 = sadd.s32 %s93, 1
      %p97 = scmp.eq.s32.totalorder %s17, 1
      %p98 = scmp.ne.s32.totalorder %s93, %s95
      %p99 = scmp.eq.s32.totalorder %s17, 0
      %p100 = por %p98, %p99
      %p101 = scmp.ne.s32.totalorder %s93, %s95
      %p102 = scmp.eq.s32.totalorder %s22, 1
      %p103 = por %p101, %p102
      %p104 = scmp.ne.s32.totalorder %s95, %s96
      %p105 = scmp.eq.s32.totalorder %s22, 0
      %p106 = por %p104, %p105
      %p107 = scmp.ne.s32.totalorder %s95, %s96
      %p108 = scmp.eq.s32.totalorder %s23, 1
      %p109 = por %p107, %p108
      %p111 = scmp.ne.s32.totalorder %s96, %s110
      %p112 = scmp.eq.s32.totalorder %s23, 0
      %p113 = por %p111, %p112
      %s115 = sadd.s32 %s114, 1
      %p118 = scmp.eq.s32.totalorder %s17, 1
      %p119 = scmp.ne.s32.totalorder %s114, %s116
      %p120 = scmp.eq.s32.totalorder %s17, 0
      %p121 = por %p119, %p120
      %p122 = scmp.ne.s32.totalorder %s114, %s116
      %p123 = scmp.eq.s32.totalorder %s22, 1
      %p124 = por %p122, %p123
      %p125 = scmp.ne.s32.totalorder %s116, %s117
      %p126 = scmp.eq.s32.totalorder %s22, 0
      %p127 = por %p125, %p126
      %p128 = scmp.ne.s32.totalorder %s116, %s117
      %p129 = scmp.eq.s32.totalorder %s23, 1
      %p130 = por %p128, %p129
      %p132 = scmp.ne.s32.totalorder %s117, %s131
      %p133 = scmp.eq.s32.totalorder %s23, 0
      %p134 = por %p132, %p133
      %s136 = sadd.s32 %s135, 1
      %p139 = scmp.eq.s32.totalorder %s17, 1
      %p140 = scmp.ne.s32.totalorder %s135, %s137
      %p141 = scmp.eq.s32.totalorder %s17, 0
      %p142 = por %p140, %p141
      %p143 = scmp.ne.s32.totalorder %s135, %s137
      %p144 = scmp.eq.s32.totalorder %s22, 1
      %p145 = por %p143, %p144
      %p146 = scmp.ne.s32.totalorder %s137, %s138
      %p147 = scmp.eq.s32.totalorder %s22, 0
      %p148 = por %p146, %p147
      %p149 = scmp.ne.s32.totalorder %s137, %s138
      %p150 = scmp.eq.s32.totalorder %s23, 1
      %p151 = por %p149, %p150
      %p153 = scmp.ne.s32.totalorder %s138, %s152
      %p154 = scmp.eq.s32.totalorder %s23, 0
      %p155 = por %p153, %p154
      %s157 = sadd.s32 %s156, 1
      %p160 = scmp.eq.s32.totalorder %s17, 1
      %p161 = scmp.ne.s32.totalorder %s156, %s158
      %p162 = scmp.eq.s32.totalorder %s17, 0
      %p163 = por %p161, %p162
      %p164 = scmp.ne.s32.totalorder %s156, %s158
      %p165 = scmp.eq.s32.totalorder %s22, 1
      %p166 = por %p164, %p165
      %p167 = scmp.ne.s32.totalorder %s158, %s159
      %p168 = scmp.eq.s32.totalorder %s22, 0
      %p169 = por %p167, %p168
      %p170 = scmp.ne.s32.totalorder %s158, %s159
      %p171 = scmp.eq.s32.totalorder %s23, 1
      %p172 = por %p170, %p171
      %p174 = scmp.ne.s32.totalorder %s159, %s173
      %p175 = scmp.eq.s32.totalorder %s23, 0
      %p176 = por %p174, %p175
      %s177 = ssub.s32 %s17, %s24
      %p178 = scmp.eq.s32.totalorder %s177, 0
      %s180 = sadd.s32 %s179, 1
      %s181 = scalar_select %p178, %s179, %s180
      %p184 = pneg %p178
      %p185 = scmp.eq.s32.totalorder %s17, 1
      %p186 = por %p184, %p185
      %p187 = scmp.ne.s32.totalorder %s179, %s182
      %p188 = scmp.eq.s32.totalorder %s17, 0
      %p189 = por %p187, %p188
      %p190 = scmp.ne.s32.totalorder %s179, %s182
      %p191 = scmp.eq.s32.totalorder %s22, 1
      %p192 = por %p190, %p191
      %p193 = scmp.ne.s32.totalorder %s182, %s183
      %p194 = scmp.eq.s32.totalorder %s22, 0
      %p195 = por %p193, %p194
      %p196 = scmp.ne.s32.totalorder %s182, %s183
      %p197 = scmp.eq.s32.totalorder %s23, 1
      %p198 = por %p196, %p197
      %p200 = scmp.ne.s32.totalorder %s183, %s199
      %p201 = scmp.eq.s32.totalorder %s23, 0
      %p202 = por %p200, %p201
      %p203 = scmp.le.s32.totalorder 1, %s17
      %p204 = scmp.lt.s32.totalorder %s17, 3
      %p205 = pnand %p203, %p204
      %p206 = pneg %p205
      // Predicated region
      $region9: #{tpu_custom_call.1} parent=5 // pred_check
        _
      $region10: #{tpu_custom_call.1} parent=5 // pred_check_branch
        %208 = sbr.rel (%p205) target = $region12
      $region11: #{tpu_custom_call.1} parent=5 // pred_region
        %s209 = ssub.s32 %s17, 1
        // Predicated region
        $region13: #{tpu_custom_call.1} parent=11 // pred_check
          %p210 = pneg %p64
        $region14: #{tpu_custom_call.1} parent=11 // pred_check_branch
          %212 = sbr.rel (%p210) target = $region16
        $region15: #{tpu_custom_call.1} parent=11 // pred_region
          _
        $region16: #{tpu_custom_call.1} parent=11 // pred_fallthru
          _
        // Predicated region
        $region17: #{tpu_custom_call.1} parent=11 // pred_check
          %p213 = pneg %p85
        $region18: #{tpu_custom_call.1} parent=11 // pred_check_branch
          %215 = sbr.rel (%p213) target = $region20
        $region19: #{tpu_custom_call.1} parent=11 // pred_region
          _
        $region20: #{tpu_custom_call.1} parent=11 // pred_fallthru
          _
        // Predicated region
        $region21: #{tpu_custom_call.1} parent=11 // pred_check
          %p216 = pneg %p106
        $region22: #{tpu_custom_call.1} parent=11 // pred_check_branch
          %218 = sbr.rel (%p216) target = $region24
        $region23: #{tpu_custom_call.1} parent=11 // pred_region
          _
        $region24: #{tpu_custom_call.1} parent=11 // pred_fallthru
          _
        // Predicated region
        $region25: #{tpu_custom_call.1} parent=11 // pred_check
          %p219 = pneg %p127
        $region26: #{tpu_custom_call.1} parent=11 // pred_check_branch
          %221 = sbr.rel (%p219) target = $region28
        $region27: #{tpu_custom_call.1} parent=11 // pred_region
          _
        $region28: #{tpu_custom_call.1} parent=11 // pred_fallthru
          _
        // Predicated region
        $region29: #{tpu_custom_call.1} parent=11 // pred_check
          %p222 = pneg %p148
        $region30: #{tpu_custom_call.1} parent=11 // pred_check_branch
          %224 = sbr.rel (%p222) target = $region32
        $region31: #{tpu_custom_call.1} parent=11 // pred_region
          _
        $region32: #{tpu_custom_call.1} parent=11 // pred_fallthru
          _
        // Predicated region
        $region33: #{tpu_custom_call.1} parent=11 // pred_check
          %p225 = pneg %p169
        $region34: #{tpu_custom_call.1} parent=11 // pred_check_branch
          %227 = sbr.rel (%p225) target = $region36
        $region35: #{tpu_custom_call.1} parent=11 // pred_region
          _
        $region36: #{tpu_custom_call.1} parent=11 // pred_fallthru
          _
      $region12: #{tpu_custom_call.1} parent=5 // pred_fallthru
        _
      %p228 = scmp.lt.s32.totalorder %s17, 2
      // Predicated region
      $region37: #{tpu_custom_call.1} parent=5 // pred_check
        %p229 = pneg %p228
      $region38: #{tpu_custom_call.1} parent=5 // pred_check_branch
        %231 = sbr.rel (%p229) target = $region40
      $region39: #{tpu_custom_call.1} parent=5 // pred_region
        // Predicated region
        $region41: #{tpu_custom_call.1} parent=39 // pred_check
          %p232 = pneg %p37
        $region42: #{tpu_custom_call.1} parent=39 // pred_check_branch
          %234 = sbr.rel (%p232) target = $region44
        $region43: #{tpu_custom_call.1} parent=39 // pred_region
          %s235 = smul.u32 64, %s17
          %s236 = ssub.s32 125, %s235
          %p237 = scmp.lt.s32.totalorder %s236, 64
          %s238 = scalar_select %p237, %s236, 64
          %s239 = smul.u32 128, %s238
          %p240 = scmp.lt.s32.totalorder %s235, 124
          %s241 = scalar_select %p240, %s235, 124
          %s242 = smul.addr %s241, 8
          %s243 = scalar_lea.vmem %s0, %s242
          %s244 = smul.u32 64, %s17
          %s245 = ssub.s32 125, %s244
          %p246 = scmp.lt.s32.totalorder %s245, 64
          %s247 = scalar_select %p246, %s245, 64
          %s248 = smul.u32 128, %s247
        $region44: #{tpu_custom_call.1} parent=39 // pred_fallthru
          _
      $region40: #{tpu_custom_call.1} parent=5 // pred_fallthru
        _
      %p249 = scmp.le.s32.totalorder 1, %s17
      %p250 = scmp.lt.s32.totalorder %s17, 3
      %p251 = pnand %p249, %p250
      %p252 = pneg %p251
      // Predicated region
      $region45: #{tpu_custom_call.1} parent=5 // pred_check
        _
      $region46: #{tpu_custom_call.1} parent=5 // pred_check_branch
        %254 = sbr.rel (%p251) target = $region48
      $region47: #{tpu_custom_call.1} parent=5 // pred_region
        %s255 = ssub.s32 %s17, 1
        %s256 = smul.u32 64, %s22
        %s257 = ssub.s32 125, %s256
        %p258 = scmp.lt.s32.totalorder %s257, 64
        %s259 = scalar_select %p258, %s257, 64
        %s260 = smul.u32 128, %s259
        %p261 = scmp.lt.s32.totalorder %s256, 124
        %s262 = scalar_select %p261, %s256, 124
        %s263 = smul.addr %s262, 8
        %s264 = scalar_lea.vmem %s0, %s263
        %p265 = pneg %p43
        %p266 = pneg %p40
        %p267 = pneg %p64
        %p268 = pneg %p61
        %p269 = pneg %p85
        %p270 = pneg %p82
        %p271 = pneg %p106
        %p272 = pneg %p103
        %p273 = pneg %p127
        %p274 = pneg %p124
        %p275 = pneg %p148
        %p276 = pneg %p145
        %p277 = pneg %p169
        %p278 = pneg %p166
        %p279 = pneg %p195
        %p280 = pneg %p192
        %s281 = sand.u32 %s182, 1
        %s282 = scalar_lea.sflag [#allocation4], %s281
        %s283 = sand.u32 %s182, 1
        %s284 = smul.addr %s283, 4
        %s285 = scalar_lea.vmem [#allocation3], %s284
        %s286 = smul.u32 64, %s22
        %s287 = ssub.s32 125, %s286
        %p288 = scmp.lt.s32.totalorder %s287, 64
        %s289 = scalar_select %p288, %s287, 64
        %s290 = smul.u32 128, %s289
        %p291 = scmp.lt.s32.totalorder %s286, 124
        %s292 = scalar_select %p291, %s286, 124
        %s293 = smul.addr %s292, 8
        %s294 = scalar_lea.vmem %s0, %s293
        %s295 = smul.u32 64, %s22
        %s296 = ssub.s32 125, %s295
        %p297 = scmp.lt.s32.totalorder %s296, 64
        %s298 = scalar_select %p297, %s296, 64
        %s299 = smul.u32 128, %s298
        %s300 = smul.u32 4, %s22
        %v301 = vld [vmem:[%s294] sm:$0xff]
        %v302 = vld [vmem:[%s294 + $0x8] sm:$0xff]
        %v303 = vld [vmem:[%s294 + $0x10] sm:$0xff]
        %v304 = vld [vmem:[%s294 + $0x18] sm:$0xff]
        %v305 = vld [vmem:[%s294 + $0x20] sm:$0xff]
        %v306 = vld [vmem:[%s294 + $0x28] sm:$0xff]
        %v307 = vld [vmem:[%s294 + $0x30] sm:$0xff]
        %v308 = vld [vmem:[%s294 + $0x38] sm:$0xff]
        %v309 = vld [vmem:[%s294 + $0x40] sm:$0xff]
        %v310 = vld [vmem:[%s294 + $0x48] sm:$0xff]
        %v311 = vld [vmem:[%s294 + $0x50] sm:$0xff]
        %v312 = vld [vmem:[%s294 + $0x58] sm:$0xff]
        %v313 = vld [vmem:[%s294 + $0x60] sm:$0xff]
        %v314 = vld [vmem:[%s294 + $0x68] sm:$0xff]
        %v315 = vld [vmem:[%s294 + $0x70] sm:$0xff]
        %v316 = vld [vmem:[%s294 + $0x78] sm:$0xff]
        %v317 = vld [vmem:[%s294 + $0x80] sm:$0xff]
        %v318 = vld [vmem:[%s294 + $0x88] sm:$0xff]
        %v319 = vld [vmem:[%s294 + $0x90] sm:$0xff]
        %v320 = vld [vmem:[%s294 + $0x98] sm:$0xff]
        %v321 = vld [vmem:[%s294 + $0xa0] sm:$0xff]
        %v322 = vld [vmem:[%s294 + $0xa8] sm:$0xff]
        %v323 = vld [vmem:[%s294 + $0xb0] sm:$0xff]
        %v324 = vld [vmem:[%s294 + $0xb8] sm:$0xff]
        %v325 = vld [vmem:[%s294 + $0xc0] sm:$0xff]
        %v326 = vld [vmem:[%s294 + $0xc8] sm:$0xff]
        %v327 = vld [vmem:[%s294 + $0xd0] sm:$0xff]
        %v328 = vld [vmem:[%s294 + $0xd8] sm:$0xff]
        %v329 = vld [vmem:[%s294 + $0xe0] sm:$0xff]
        %v330 = vld [vmem:[%s294 + $0xe8] sm:$0xff]
        %v331 = vld [vmem:[%s294 + $0xf0] sm:$0xff]
        %v332 = vld [vmem:[%s294 + $0xf8] sm:$0xff]
        %v333 = vld [vmem:[%s294 + $0x100] sm:$0xff]
        %v334 = vld [vmem:[%s294 + $0x108] sm:$0xff]
        %v335 = vld [vmem:[%s294 + $0x110] sm:$0xff]
        %v336 = vld [vmem:[%s294 + $0x118] sm:$0xff]
        %v337 = vld [vmem:[%s294 + $0x120] sm:$0xff]
        %v338 = vld [vmem:[%s294 + $0x128] sm:$0xff]
        %v339 = vld [vmem:[%s294 + $0x130] sm:$0xff]
        %v340 = vld [vmem:[%s294 + $0x138] sm:$0xff]
        %v341 = vld [vmem:[%s294 + $0x140] sm:$0xff]
        %v342 = vld [vmem:[%s294 + $0x148] sm:$0xff]
        %v343 = vld [vmem:[%s294 + $0x150] sm:$0xff]
        %v344 = vld [vmem:[%s294 + $0x158] sm:$0xff]
        %v345 = vld [vmem:[%s294 + $0x160] sm:$0xff]
        %v346 = vld [vmem:[%s294 + $0x168] sm:$0xff]
        %v347 = vld [vmem:[%s294 + $0x170] sm:$0xff]
        %v348 = vld [vmem:[%s294 + $0x178] sm:$0xff]
        %v349 = vld [vmem:[%s294 + $0x180] sm:$0xff]
        %v350 = vld [vmem:[%s294 + $0x188] sm:$0xff]
        %v351 = vld [vmem:[%s294 + $0x190] sm:$0xff]
        %v352 = vld [vmem:[%s294 + $0x198] sm:$0xff]
        %v353 = vld [vmem:[%s294 + $0x1a0] sm:$0xff]
        %v354 = vld [vmem:[%s294 + $0x1a8] sm:$0xff]
        %v355 = vld [vmem:[%s294 + $0x1b0] sm:$0xff]
        %v356 = vld [vmem:[%s294 + $0x1b8] sm:$0xff]
        %v357 = vld [vmem:[%s294 + $0x1c0] sm:$0xff]
        %v358 = vld [vmem:[%s294 + $0x1c8] sm:$0xff]
        %v359 = vld [vmem:[%s294 + $0x1d0] sm:$0xff]
        %v360 = vld [vmem:[%s294 + $0x1d8] sm:$0xff]
        %v361 = vld [vmem:[%s294 + $0x1e0] sm:$0xff]
        %v362 = vld [vmem:[%s294 + $0x1e8] sm:$0xff]
        %v363 = vld [vmem:[%s294 + $0x1f0] sm:$0xff]
        %v364 = vld [vmem:[%s294 + $0x1f8] sm:$0xff]
        %v365 = vld [vmem:[%s1] sm:$0xff]
        %v366 = vld [vmem:[%s1 + $0x8] sm:$0xff]
        %v367 = vld [vmem:[%s1 + $0x10] sm:$0xff]
        %v368 = vld [vmem:[%s1 + $0x18] sm:$0xff]
        %v369 = vld [vmem:[%s2] sm:$0xff]
        %v370 = vld [vmem:[%s2 + $0x8] sm:$0xff]
        %v371 = vld [vmem:[%s2 + $0x10] sm:$0xff]
        %v372 = vld [vmem:[%s2 + $0x18] sm:$0xff]
        %374 = vset.pattern.permute.xlu0 0
        %375 = vperm.xlu0 %374, %v369
        %v376 = vpop.permute.xlu0 %375
        %379 = vset.pattern.permute.xlu0 0
        %380 = vperm.xlu0 %379, %v370
        %v381 = vpop.permute.xlu0 %380
        %384 = vset.pattern.permute.xlu0 0
        %385 = vperm.xlu0 %384, %v371
        %v386 = vpop.permute.xlu0 %385
        %389 = vset.pattern.permute.xlu0 0
        %390 = vperm.xlu0 %389, %v372
        %v391 = vpop.permute.xlu0 %390
        %vm393 = vcmask 15360
        %v395 = vsel %vm393, %v365, 0
        %v398 = vsel %vm393, %v366, 0
        %v401 = vsel %vm393, %v367, 0
        %v404 = vsel %vm393, %v368, 0
        %v407 = vsel %vm393, %v301, 0
        %v410 = vsel %vm393, %v302, 0
        %v413 = vsel %vm393, %v303, 0
        %v416 = vsel %vm393, %v304, 0
        %v419 = vsel %vm393, %v305, 0
        %v422 = vsel %vm393, %v306, 0
        %v425 = vsel %vm393, %v307, 0
        %v428 = vsel %vm393, %v308, 0
        %v431 = vsel %vm393, %v309, 0
        %v434 = vsel %vm393, %v310, 0
        %v437 = vsel %vm393, %v311, 0
        %v440 = vsel %vm393, %v312, 0
        %v443 = vsel %vm393, %v313, 0
        %v446 = vsel %vm393, %v314, 0
        %v449 = vsel %vm393, %v315, 0
        %v452 = vsel %vm393, %v316, 0
        %v455 = vsel %vm393, %v317, 0
        %v458 = vsel %vm393, %v318, 0
        %v461 = vsel %vm393, %v319, 0
        %v464 = vsel %vm393, %v320, 0
        %v467 = vsel %vm393, %v321, 0
        %v470 = vsel %vm393, %v322, 0
        %v473 = vsel %vm393, %v323, 0
        %v476 = vsel %vm393, %v324, 0
        %v479 = vsel %vm393, %v325, 0
        %v482 = vsel %vm393, %v326, 0
        %v485 = vsel %vm393, %v327, 0
        %v488 = vsel %vm393, %v328, 0
        %v491 = vsel %vm393, %v329, 0
        %v494 = vsel %vm393, %v330, 0
        %v497 = vsel %vm393, %v331, 0
        %v500 = vsel %vm393, %v332, 0
        %v503 = vsel %vm393, %v333, 0
        %v506 = vsel %vm393, %v334, 0
        %v509 = vsel %vm393, %v335, 0
        %v512 = vsel %vm393, %v336, 0
        %v515 = vsel %vm393, %v337, 0
        %v518 = vsel %vm393, %v338, 0
        %v521 = vsel %vm393, %v339, 0
        %v524 = vsel %vm393, %v340, 0
        %v527 = vsel %vm393, %v341, 0
        %v530 = vsel %vm393, %v342, 0
        %v533 = vsel %vm393, %v343, 0
        %v536 = vsel %vm393, %v344, 0
        %v539 = vsel %vm393, %v345, 0
        %v542 = vsel %vm393, %v346, 0
        %v545 = vsel %vm393, %v347, 0
        %v548 = vsel %vm393, %v348, 0
        %v551 = vsel %vm393, %v349, 0
        %v554 = vsel %vm393, %v350, 0
        %v557 = vsel %vm393, %v351, 0
        %v560 = vsel %vm393, %v352, 0
        %v563 = vsel %vm393, %v353, 0
        %v566 = vsel %vm393, %v354, 0
        %v569 = vsel %vm393, %v355, 0
        %v572 = vsel %vm393, %v356, 0
        %v575 = vsel %vm393, %v357, 0
        %v578 = vsel %vm393, %v358, 0
        %v581 = vsel %vm393, %v359, 0
        %v584 = vsel %vm393, %v360, 0
        %v587 = vsel %vm393, %v361, 0
        %v590 = vsel %vm393, %v362, 0
        %v593 = vsel %vm393, %v363, 0
        %v596 = vsel %vm393, %v364, 0
        %598 = vmatprep.subr.mxu0 0.0
        %599 = vmatpush1.xpose.msra.mxu0 %v407
        %600 = vmatprep.subr.mxu0 0.0
        %601 = vmatpush1.xpose.msra.mxu0 %v410
        %602 = vmatprep.subr.mxu0 0.0
        %603 = vmatpush1.xpose.msra.mxu0 %v413
        %604 = vmatprep.subr.mxu0 0.0
        %605 = vmatpush1.xpose.msra.mxu0 %v416
        %606 = vmatprep.subr.mxu0 0.0
        %607 = vmatpush1.xpose.msra.mxu0 %v419
        %608 = vmatprep.subr.mxu0 0.0
        %609 = vmatpush1.xpose.msra.mxu0 %v422
        %610 = vmatprep.subr.mxu0 0.0
        %611 = vmatpush1.xpose.msra.mxu0 %v425
        %612 = vmatprep.subr.mxu0 0.0
        %613 = vmatpush1.xpose.msra.mxu0 %v428
        %614 = vmatprep.subr.mxu0 0.0
        %615 = vmatpush1.xpose.msra.mxu0 %v431
        %616 = vmatprep.subr.mxu0 0.0
        %617 = vmatpush1.xpose.msra.mxu0 %v434
        %618 = vmatprep.subr.mxu0 0.0
        %619 = vmatpush1.xpose.msra.mxu0 %v437
        %620 = vmatprep.subr.mxu0 0.0
        %621 = vmatpush1.xpose.msra.mxu0 %v440
        %622 = vmatprep.subr.mxu0 0.0
        %623 = vmatpush1.xpose.msra.mxu0 %v443
        %624 = vmatprep.subr.mxu0 0.0
        %625 = vmatpush1.xpose.msra.mxu0 %v446
        %626 = vmatprep.subr.mxu0 0.0
        %627 = vmatpush1.xpose.msra.mxu0 %v449
        %628 = vmatprep.subr.mxu0 0.0
        %629 = vmatpush1.xpose.msra.mxu0 %v452
        %630 = vmatprep.subr.mxu0 0.0
        %631 = vmatpush1.xpose.msra.mxu0 %v455
        %632 = vmatprep.subr.mxu0 0.0
        %633 = vmatpush1.xpose.msra.mxu0 %v458
        %634 = vmatprep.subr.mxu0 0.0
        %635 = vmatpush1.xpose.msra.mxu0 %v461
        %636 = vmatprep.subr.mxu0 0.0
        %637 = vmatpush1.xpose.msra.mxu0 %v464
        %638 = vmatprep.subr.mxu0 0.0
        %639 = vmatpush1.xpose.msra.mxu0 %v467
        %640 = vmatprep.subr.mxu0 0.0
        %641 = vmatpush1.xpose.msra.mxu0 %v470
        %642 = vmatprep.subr.mxu0 0.0
        %643 = vmatpush1.xpose.msra.mxu0 %v473
        %644 = vmatprep.subr.mxu0 0.0
        %645 = vmatpush1.xpose.msra.mxu0 %v476
        %646 = vmatprep.subr.mxu0 0.0
        %647 = vmatpush1.xpose.msra.mxu0 %v479
        %648 = vmatprep.subr.mxu0 0.0
        %649 = vmatpush1.xpose.msra.mxu0 %v482
        %650 = vmatprep.subr.mxu0 0.0
        %651 = vmatpush1.xpose.msra.mxu0 %v485
        %652 = vmatprep.subr.mxu0 0.0
        %653 = vmatpush1.xpose.msra.mxu0 %v488
        %654 = vmatprep.subr.mxu0 0.0
        %655 = vmatpush1.xpose.msra.mxu0 %v491
        %656 = vmatprep.subr.mxu0 0.0
        %657 = vmatpush1.xpose.msra.mxu0 %v494
        %658 = vmatprep.subr.mxu0 0.0
        %659 = vmatpush1.xpose.msra.mxu0 %v497
        %660 = vmatprep.subr.mxu0 0.0
        %661 = vmatpush1.xpose.msra.mxu0 %v500
        %662 = vmatprep.mubr.f32.mxu0 0.0
        %663 = vmatmul.mubr.f32.gmra.mrb[0].mxu0 %v395
        %v664 = vpop.f32.mrb[0].mxu0
        %v665 = vadd.f32 %v376, %v664
        %v666 = vpop.f32.mrb[0].mxu0
        %v667 = vadd.f32 %v376, %v666
        %668 = vmatprep.mubr.f32.mxu0 0.0
        %669 = vmatmul.mubr.f32.gmra.mrb[0].mxu0 %v398
        %v670 = vpop.f32.mrb[0].mxu0
        %v671 = vadd.f32 %v381, %v670
        %v672 = vpop.f32.mrb[0].mxu0
        %v673 = vadd.f32 %v381, %v672
        %674 = vmatprep.mubr.f32.mxu0 0.0
        %675 = vmatmul.mubr.f32.gmra.mrb[0].mxu0 %v401
        %v676 = vpop.f32.mrb[0].mxu0
        %v677 = vadd.f32 %v386, %v676
        %v678 = vpop.f32.mrb[0].mxu0
        %v679 = vadd.f32 %v386, %v678
        %680 = vmatprep.mubr.f32.mxu0 0.0
        %681 = vmatmul.mubr.f32.gmra.mrb[0].mxu0 %v404
        %v682 = vpop.f32.mrb[0].mxu0
        %v683 = vadd.f32 %v391, %v682
        %v684 = vpop.f32.mrb[0].mxu0
        %v685 = vadd.f32 %v391, %v684
        %686 = vdwg.mxu0
        %687 = vmatprep.subr.mxu0 0.0
        %688 = vmatpush1.xpose.msra.mxu0 %v503
        %689 = vmatprep.subr.mxu0 0.0
        %690 = vmatpush1.xpose.msra.mxu0 %v506
        %691 = vmatprep.subr.mxu0 0.0
        %692 = vmatpush1.xpose.msra.mxu0 %v509
        %693 = vmatprep.subr.mxu0 0.0
        %694 = vmatpush1.xpose.msra.mxu0 %v512
        %695 = vmatprep.subr.mxu0 0.0
        %696 = vmatpush1.xpose.msra.mxu0 %v515
        %697 = vmatprep.subr.mxu0 0.0
        %698 = vmatpush1.xpose.msra.mxu0 %v518
        %699 = vmatprep.subr.mxu0 0.0
        %700 = vmatpush1.xpose.msra.mxu0 %v521
        %701 = vmatprep.subr.mxu0 0.0
        %702 = vmatpush1.xpose.msra.mxu0 %v524
        %703 = vmatprep.subr.mxu0 0.0
        %704 = vmatpush1.xpose.msra.mxu0 %v527
        %705 = vmatprep.subr.mxu0 0.0
        %706 = vmatpush1.xpose.msra.mxu0 %v530
        %707 = vmatprep.subr.mxu0 0.0
        %708 = vmatpush1.xpose.msra.mxu0 %v533
        %709 = vmatprep.subr.mxu0 0.0
        %710 = vmatpush1.xpose.msra.mxu0 %v536
        %711 = vmatprep.subr.mxu0 0.0
        %712 = vmatpush1.xpose.msra.mxu0 %v539
        %713 = vmatprep.subr.mxu0 0.0
        %714 = vmatpush1.xpose.msra.mxu0 %v542
        %715 = vmatprep.subr.mxu0 0.0
        %716 = vmatpush1.xpose.msra.mxu0 %v545
        %717 = vmatprep.subr.mxu0 0.0
        %718 = vmatpush1.xpose.msra.mxu0 %v548
        %719 = vmatprep.subr.mxu0 0.0
        %720 = vmatpush1.xpose.msra.mxu0 %v551
        %721 = vmatprep.subr.mxu0 0.0
        %722 = vmatpush1.xpose.msra.mxu0 %v554
        %723 = vmatprep.subr.mxu0 0.0
        %724 = vmatpush1.xpose.msra.mxu0 %v557
        %725 = vmatprep.subr.mxu0 0.0
        %726 = vmatpush1.xpose.msra.mxu0 %v560
        %727 = vmatprep.subr.mxu0 0.0
        %728 = vmatpush1.xpose.msra.mxu0 %v563
        %729 = vmatprep.subr.mxu0 0.0
        %730 = vmatpush1.xpose.msra.mxu0 %v566
        %731 = vmatprep.subr.mxu0 0.0
        %732 = vmatpush1.xpose.msra.mxu0 %v569
        %733 = vmatprep.subr.mxu0 0.0
        %734 = vmatpush1.xpose.msra.mxu0 %v572
        %735 = vmatprep.subr.mxu0 0.0
        %736 = vmatpush1.xpose.msra.mxu0 %v575
        %737 = vmatprep.subr.mxu0 0.0
        %738 = vmatpush1.xpose.msra.mxu0 %v578
        %739 = vmatprep.subr.mxu0 0.0
        %740 = vmatpush1.xpose.msra.mxu0 %v581
        %741 = vmatprep.subr.mxu0 0.0
        %742 = vmatpush1.xpose.msra.mxu0 %v584
        %743 = vmatprep.subr.mxu0 0.0
        %744 = vmatpush1.xpose.msra.mxu0 %v587
        %745 = vmatprep.subr.mxu0 0.0
        %746 = vmatpush1.xpose.msra.mxu0 %v590
        %747 = vmatprep.subr.mxu0 0.0
        %748 = vmatpush1.xpose.msra.mxu0 %v593
        %749 = vmatprep.subr.mxu0 0.0
        %750 = vmatpush1.xpose.msra.mxu0 %v596
        %751 = vmatprep.mubr.f32.mxu0 0.0
        %752 = vmatmul.mubr.f32.gmra.mrb[0].mxu0 %v395
        %v753 = vpop.f32.mrb[0].mxu0
        %v754 = vadd.f32 %v376, %v753
        %v755 = vpop.f32.mrb[0].mxu0
        %v756 = vadd.f32 %v376, %v755
        %757 = vmatprep.mubr.f32.mxu0 0.0
        %758 = vmatmul.mubr.f32.gmra.mrb[0].mxu0 %v398
        %v759 = vpop.f32.mrb[0].mxu0
        %v760 = vadd.f32 %v381, %v759
        %v761 = vpop.f32.mrb[0].mxu0
        %v762 = vadd.f32 %v381, %v761
        %763 = vmatprep.mubr.f32.mxu0 0.0
        %764 = vmatmul.mubr.f32.gmra.mrb[0].mxu0 %v401
        %v765 = vpop.f32.mrb[0].mxu0
        %v766 = vadd.f32 %v386, %v765
        %v767 = vpop.f32.mrb[0].mxu0
        %v768 = vadd.f32 %v386, %v767
        %769 = vmatprep.mubr.f32.mxu0 0.0
        %770 = vmatmul.mubr.f32.gmra.mrb[0].mxu0 %v404
        %v771 = vpop.f32.mrb[0].mxu0
        %v772 = vadd.f32 %v391, %v771
        %v773 = vpop.f32.mrb[0].mxu0
        %v774 = vadd.f32 %v391, %v773
        %775 = vdwg.mxu0
        %v776 = vtanh.pop %v665
        %v777 = vtanh.pop %v667
        %v778 = vtanh.pop %v754
        %v779 = vtanh.pop %v756
        %v780 = vtanh.pop %v671
        %v781 = vtanh.pop %v673
        %v782 = vtanh.pop %v760
        %v783 = vtanh.pop %v762
        %v784 = vtanh.pop %v677
        %v785 = vtanh.pop %v679
        %v786 = vtanh.pop %v766
        %v787 = vtanh.pop %v768
        %v788 = vtanh.pop %v683
        %v789 = vtanh.pop %v685
        %v790 = vtanh.pop %v772
        %v791 = vtanh.pop %v774
        %v792 = vld [vmem:[%s3] sm:$0xff]
        %v793 = vld [vmem:[%s3 + $0x8] sm:$0xff]
        %v794 = vld [vmem:[%s3 + $0x10] sm:$0xff]
        %v795 = vld [vmem:[%s3 + $0x18] sm:$0xff]
        %v796 = vld [vmem:[%s4] sm:$0xff]
        %v797 = vld [vmem:[%s4 + $0x8] sm:$0xff]
        %v798 = vld [vmem:[%s4 + $0x10] sm:$0xff]
        %v799 = vld [vmem:[%s4 + $0x18] sm:$0xff]
        %801 = vset.pattern.permute.xlu0 0
        %802 = vperm.xlu0 %801, %v796
        %v803 = vpop.permute.xlu0 %802
        %806 = vset.pattern.permute.xlu0 0
        %807 = vperm.xlu0 %806, %v797
        %v808 = vpop.permute.xlu0 %807
        %811 = vset.pattern.permute.xlu0 0
        %812 = vperm.xlu0 %811, %v798
        %v813 = vpop.permute.xlu0 %812
        %816 = vset.pattern.permute.xlu0 0
        %817 = vperm.xlu0 %816, %v799
        %v818 = vpop.permute.xlu0 %817
        %vm820 = vcmask 261120
        %v822 = vsel %vm820, %v792, 0
        %v825 = vsel %vm820, %v793, 0
        %v828 = vsel %vm820, %v794, 0
        %v831 = vsel %vm820, %v795, 0
        %833 = vmatprep.subr.mxu0 %v777
        %834 = vmatpush1.msra.mxu0 %v776
        %835 = vmatprep.subr.mxu0 %v781
        %836 = vmatpush1.msra.mxu0 %v780
        %837 = vmatprep.subr.mxu0 %v785
        %838 = vmatpush1.msra.mxu0 %v784
        %839 = vmatprep.subr.mxu0 %v789
        %840 = vmatpush1.msra.mxu0 %v788
        %841 = vmatprep.subr.mxu0 0.0
        %842 = vmatpush1.msra.mxu0 0.0
        %843 = vmatprep.subr.mxu0 0.0
        %844 = vmatpush1.msra.mxu0 0.0
        %845 = vmatprep.subr.mxu0 0.0
        %846 = vmatpush1.msra.mxu0 0.0
        %847 = vmatprep.subr.mxu0 0.0
        %848 = vmatpush1.msra.mxu0 0.0
        %849 = vmatprep.subr.mxu0 0.0
        %850 = vmatpush1.msra.mxu0 0.0
        %851 = vmatprep.subr.mxu0 0.0
        %852 = vmatpush1.msra.mxu0 0.0
        %853 = vmatprep.subr.mxu0 0.0
        %854 = vmatpush1.msra.mxu0 0.0
        %855 = vmatprep.subr.mxu0 0.0
        %856 = vmatpush1.msra.mxu0 0.0
        %857 = vmatprep.subr.mxu0 0.0
        %858 = vmatpush1.msra.mxu0 0.0
        %859 = vmatprep.subr.mxu0 0.0
        %860 = vmatpush1.msra.mxu0 0.0
        %861 = vmatprep.subr.mxu0 0.0
        %862 = vmatpush1.msra.mxu0 0.0
        %863 = vmatprep.subr.mxu0 0.0
        %864 = vmatpush1.msra.mxu0 0.0
        %865 = vmatprep.subr.mxu0 0.0
        %866 = vmatpush1.msra.mxu0 0.0
        %867 = vmatprep.subr.mxu0 0.0
        %868 = vmatpush1.msra.mxu0 0.0
        %869 = vmatprep.subr.mxu0 0.0
        %870 = vmatpush1.msra.mxu0 0.0
        %871 = vmatprep.subr.mxu0 0.0
        %872 = vmatpush1.msra.mxu0 0.0
        %873 = vmatprep.subr.mxu0 0.0
        %874 = vmatpush1.msra.mxu0 0.0
        %875 = vmatprep.subr.mxu0 0.0
        %876 = vmatpush1.msra.mxu0 0.0
        %877 = vmatprep.subr.mxu0 0.0
        %878 = vmatpush1.msra.mxu0 0.0
        %879 = vmatprep.subr.mxu0 0.0
        %880 = vmatpush1.msra.mxu0 0.0
        %881 = vmatprep.subr.mxu0 0.0
        %882 = vmatpush1.msra.mxu0 0.0
        %883 = vmatprep.subr.mxu0 0.0
        %884 = vmatpush1.msra.mxu0 0.0
        %885 = vmatprep.subr.mxu0 0.0
        %886 = vmatpush1.msra.mxu0 0.0
        %887 = vmatprep.subr.mxu0 0.0
        %888 = vmatpush1.msra.mxu0 0.0
        %889 = vmatprep.subr.mxu0 0.0
        %890 = vmatpush1.msra.mxu0 0.0
        %891 = vmatprep.subr.mxu0 0.0
        %892 = vmatpush1.msra.mxu0 0.0
        %893 = vmatprep.subr.mxu0 0.0
        %894 = vmatpush1.msra.mxu0 0.0
        %895 = vmatprep.subr.mxu0 0.0
        %896 = vmatpush1.msra.mxu0 0.0
        %897 = vmatprep.mubr.f32.mxu0 0.0
        %898 = vmatmul.mubr.f32.gmra.mrb[0].mxu0 %v822
        %v899 = vpop.f32.mrb[0].mxu0
        %v900 = vadd.f32 %v803, %v899
        %v901 = vpop.f32.mrb[0].mxu0
        %v902 = vadd.f32 %v803, %v901
        %903 = vmatprep.mubr.f32.mxu0 0.0
        %904 = vmatmul.mubr.f32.gmra.mrb[0].mxu0 %v825
        %v905 = vpop.f32.mrb[0].mxu0
        %v906 = vadd.f32 %v808, %v905
        %v907 = vpop.f32.mrb[0].mxu0
        %v908 = vadd.f32 %v808, %v907
        %909 = vmatprep.mubr.f32.mxu0 0.0
        %910 = vmatmul.mubr.f32.gmra.mrb[0].mxu0 %v828
        %v911 = vpop.f32.mrb[0].mxu0
        %v912 = vadd.f32 %v813, %v911
        %v913 = vpop.f32.mrb[0].mxu0
        %v914 = vadd.f32 %v813, %v913
        %915 = vmatprep.mubr.f32.mxu0 0.0
        %916 = vmatmul.mubr.f32.gmra.mrb[0].mxu0 %v831
        %v917 = vpop.f32.mrb[0].mxu0
        %v918 = vadd.f32 %v818, %v917
        %v919 = vpop.f32.mrb[0].mxu0
        %v920 = vadd.f32 %v818, %v919
        %921 = vdwg.mxu0
        %922 = vmatprep.subr.mxu0 %v779
        %923 = vmatpush1.msra.mxu0 %v778
        %924 = vmatprep.subr.mxu0 %v783
        %925 = vmatpush1.msra.mxu0 %v782
        %926 = vmatprep.subr.mxu0 %v787
        %927 = vmatpush1.msra.mxu0 %v786
        %928 = vmatprep.subr.mxu0 %v791
        %929 = vmatpush1.msra.mxu0 %v790
        %930 = vmatprep.subr.mxu0 0.0
        %931 = vmatpush1.msra.mxu0 0.0
        %932 = vmatprep.subr.mxu0 0.0
        %933 = vmatpush1.msra.mxu0 0.0
        %934 = vmatprep.subr.mxu0 0.0
        %935 = vmatpush1.msra.mxu0 0.0
        %936 = vmatprep.subr.mxu0 0.0
        %937 = vmatpush1.msra.mxu0 0.0
        %938 = vmatprep.subr.mxu0 0.0
        %939 = vmatpush1.msra.mxu0 0.0
        %940 = vmatprep.subr.mxu0 0.0
        %941 = vmatpush1.msra.mxu0 0.0
        %942 = vmatprep.subr.mxu0 0.0
        %943 = vmatpush1.msra.mxu0 0.0
        %944 = vmatprep.subr.mxu0 0.0
        %945 = vmatpush1.msra.mxu0 0.0
        %946 = vmatprep.subr.mxu0 0.0
        %947 = vmatpush1.msra.mxu0 0.0
        %948 = vmatprep.subr.mxu0 0.0
        %949 = vmatpush1.msra.mxu0 0.0
        %950 = vmatprep.subr.mxu0 0.0
        %951 = vmatpush1.msra.mxu0 0.0
        %952 = vmatprep.subr.mxu0 0.0
        %953 = vmatpush1.msra.mxu0 0.0
        %954 = vmatprep.subr.mxu0 0.0
        %955 = vmatpush1.msra.mxu0 0.0
        %956 = vmatprep.subr.mxu0 0.0
        %957 = vmatpush1.msra.mxu0 0.0
        %958 = vmatprep.subr.mxu0 0.0
        %959 = vmatpush1.msra.mxu0 0.0
        %960 = vmatprep.subr.mxu0 0.0
        %961 = vmatpush1.msra.mxu0 0.0
        %962 = vmatprep.subr.mxu0 0.0
        %963 = vmatpush1.msra.mxu0 0.0
        %964 = vmatprep.subr.mxu0 0.0
        %965 = vmatpush1.msra.mxu0 0.0
        %966 = vmatprep.subr.mxu0 0.0
        %967 = vmatpush1.msra.mxu0 0.0
        %968 = vmatprep.subr.mxu0 0.0
        %969 = vmatpush1.msra.mxu0 0.0
        %970 = vmatprep.subr.mxu0 0.0
        %971 = vmatpush1.msra.mxu0 0.0
        %972 = vmatprep.subr.mxu0 0.0
        %973 = vmatpush1.msra.mxu0 0.0
        %974 = vmatprep.subr.mxu0 0.0
        %975 = vmatpush1.msra.mxu0 0.0
        %976 = vmatprep.subr.mxu0 0.0
        %977 = vmatpush1.msra.mxu0 0.0
        %978 = vmatprep.subr.mxu0 0.0
        %979 = vmatpush1.msra.mxu0 0.0
        %980 = vmatprep.subr.mxu0 0.0
        %981 = vmatpush1.msra.mxu0 0.0
        %982 = vmatprep.subr.mxu0 0.0
        %983 = vmatpush1.msra.mxu0 0.0
        %984 = vmatprep.subr.mxu0 0.0
        %985 = vmatpush1.msra.mxu0 0.0
        %986 = vmatprep.mubr.f32.mxu0 0.0
        %987 = vmatmul.mubr.f32.gmra.mrb[0].mxu0 %v822
        %v988 = vpop.f32.mrb[0].mxu0
        %v989 = vadd.f32 %v803, %v988
        %v990 = vpop.f32.mrb[0].mxu0
        %v991 = vadd.f32 %v803, %v990
        %992 = vmatprep.mubr.f32.mxu0 0.0
        %993 = vmatmul.mubr.f32.gmra.mrb[0].mxu0 %v825
        %v994 = vpop.f32.mrb[0].mxu0
        %v995 = vadd.f32 %v808, %v994
        %v996 = vpop.f32.mrb[0].mxu0
        %v997 = vadd.f32 %v808, %v996
        %998 = vmatprep.mubr.f32.mxu0 0.0
        %999 = vmatmul.mubr.f32.gmra.mrb[0].mxu0 %v828
        %v1000 = vpop.f32.mrb[0].mxu0
        %v1001 = vadd.f32 %v813, %v1000
        %v1002 = vpop.f32.mrb[0].mxu0
        %v1003 = vadd.f32 %v813, %v1002
        %1004 = vmatprep.mubr.f32.mxu0 0.0
        %1005 = vmatmul.mubr.f32.gmra.mrb[0].mxu0 %v831
        %v1006 = vpop.f32.mrb[0].mxu0
        %v1007 = vadd.f32 %v818, %v1006
        %v1008 = vpop.f32.mrb[0].mxu0
        %v1009 = vadd.f32 %v818, %v1008
        %1010 = vdwg.mxu0
        %v1011 = vtanh.pop %v900
        %v1012 = vtanh.pop %v902
        %v1013 = vtanh.pop %v989
        %v1014 = vtanh.pop %v991
        %v1015 = vtanh.pop %v906
        %v1016 = vtanh.pop %v908
        %v1017 = vtanh.pop %v995
        %v1018 = vtanh.pop %v997
        %v1019 = vtanh.pop %v912
        %v1020 = vtanh.pop %v914
        %v1021 = vtanh.pop %v1001
        %v1022 = vtanh.pop %v1003
        %v1023 = vtanh.pop %v918
        %v1024 = vtanh.pop %v920
        %v1025 = vtanh.pop %v1007
        %v1026 = vtanh.pop %v1009
        %v1027 = vld [vmem:[%s5] sm:$0xff]
        %v1028 = vld [vmem:[%s5 + $0x8] sm:$0xff]
        %v1029 = vld [vmem:[%s5 + $0x10] sm:$0xff]
        %v1030 = vld [vmem:[%s5 + $0x18] sm:$0xff]
        %1032 = vset.pattern.permute.xlu0 0
        %1033 = vperm.xlu0 %1032, %v1027
        %v1034 = vpop.permute.xlu0 %1033
        %1037 = vset.pattern.permute.xlu0 0
        %1038 = vperm.xlu0 %1037, %v1028
        %v1039 = vpop.permute.xlu0 %1038
        %1042 = vset.pattern.permute.xlu0 0
        %1043 = vperm.xlu0 %1042, %v1029
        %v1044 = vpop.permute.xlu0 %1043
        %1047 = vset.pattern.permute.xlu0 0
        %1048 = vperm.xlu0 %1047, %v1030
        %v1049 = vpop.permute.xlu0 %1048
        %v1051 = vmul.f32 %v1034, %v1011
        %v1052 = vmul.f32 %v1034, %v1012
        %v1053 = vmul.f32 %v1034, %v1013
        %v1054 = vmul.f32 %v1034, %v1014
        %v1055 = vmul.f32 %v1039, %v1015
        %v1056 = vmul.f32 %v1039, %v1016
        %v1057 = vmul.f32 %v1039, %v1017
        %v1058 = vmul.f32 %v1039, %v1018
        %v1059 = vmul.f32 %v1044, %v1019
        %v1060 = vmul.f32 %v1044, %v1020
        %v1061 = vmul.f32 %v1044, %v1021
        %v1062 = vmul.f32 %v1044, %v1022
        %v1063 = vmul.f32 %v1049, %v1023
        %v1064 = vmul.f32 %v1049, %v1024
        %v1065 = vmul.f32 %v1049, %v1025
        %v1066 = vmul.f32 %v1049, %v1026
        %v1067 = vadd.f32 %v1051, %v1055
        %v1068 = vadd.f32 %v1067, %v1059
        %v1069 = vadd.f32 %v1068, %v1063
        %v1070 = vrot.slane %v1069, 4
        %v1071 = vadd.f32 %v1069, %v1070
        %v1072 = vrot.slane %v1071, 2
        %v1073 = vadd.f32 %v1071, %v1072
        %v1074 = vrot.slane %v1073, 1
        %v1075 = vadd.f32 %v1073, %v1074
        %v1076 = vadd.f32 %v1052, %v1056
        %v1077 = vadd.f32 %v1076, %v1060
        %v1078 = vadd.f32 %v1077, %v1064
        %v1079 = vrot.slane %v1078, 4
        %v1080 = vadd.f32 %v1078, %v1079
        %v1081 = vrot.slane %v1080, 2
        %v1082 = vadd.f32 %v1080, %v1081
        %v1083 = vrot.slane %v1082, 1
        %v1084 = vadd.f32 %v1082, %v1083
        %v1085 = vadd.f32 %v1053, %v1057
        %v1086 = vadd.f32 %v1085, %v1061
        %v1087 = vadd.f32 %v1086, %v1065
        %v1088 = vrot.slane %v1087, 4
        %v1089 = vadd.f32 %v1087, %v1088
        %v1090 = vrot.slane %v1089, 2
        %v1091 = vadd.f32 %v1089, %v1090
        %v1092 = vrot.slane %v1091, 1
        %v1093 = vadd.f32 %v1091, %v1092
        %v1094 = vadd.f32 %v1054, %v1058
        %v1095 = vadd.f32 %v1094, %v1062
        %v1096 = vadd.f32 %v1095, %v1066
        %v1097 = vrot.slane %v1096, 4
        %v1098 = vadd.f32 %v1096, %v1097
        %v1099 = vrot.slane %v1098, 2
        %v1100 = vadd.f32 %v1098, %v1099
        %v1101 = vrot.slane %v1100, 1
        %v1102 = vadd.f32 %v1100, %v1101
        %s1103 = sld [smem:[#allocation2]]
        %v1104 = vstv %s1103
        %v1105 = vadd.f32 %v1075, %v1104
        %v1106 = vadd.f32 %v1084, %v1104
        %v1107 = vadd.f32 %v1093, %v1104
        %v1108 = vadd.f32 %v1102, %v1104
        %v1109 = vmul.f32 %v1105, 0.5
        %v1110 = vmul.f32 %v1106, 0.5
        %v1111 = vmul.f32 %v1107, 0.5
        %v1112 = vmul.f32 %v1108, 0.5
        %v1113 = vtanh.pop %v1109
        %v1114 = vtanh.pop %v1110
        %v1115 = vtanh.pop %v1111
        %v1116 = vtanh.pop %v1112
        %v1117 = vadd.f32 %v1113, 1.0
        %v1118 = vadd.f32 %v1114, 1.0
        %v1119 = vadd.f32 %v1115, 1.0
        %v1120 = vadd.f32 %v1116, 1.0
        %v1121 = vmul.f32 %v1117, 0.5
        %v1122 = vmul.f32 %v1118, 0.5
        %v1123 = vmul.f32 %v1119, 0.5
        %v1124 = vmul.f32 %v1120, 0.5
        %v1129 = vcombine.low %v1121, %v1122
        %v1130 = vcombine.low %v1123, %v1124
        %v1132 = vunpack.c.l.s4 1966171168
        %v1133 = vunpack.c.0.s8 %v1132
        %v1134 = vlaneseq
        %v1135 = vshrl.u32 %v1134, 7
        %v1136 = vsub.s32 %v1133, %v1135
        %v1137 = vrot.slane %v1129, %v1136
        %v1139 = vunpack.c.l.s4 1966171168
        %v1140 = vunpack.c.0.s8 %v1139
        %v1141 = vlaneseq
        %v1142 = vshrl.u32 %v1141, 7
        %v1143 = vsub.s32 %v1140, %v1142
        %v1144 = vrot.slane %v1130, %v1143
        %v1145 = vcombine.low %v1137, %v1144
        %v1147 = vunpack.c.l.s4 1966171168
        %v1148 = vunpack.c.0.s8 %v1147
        %v1149 = vlaneseq
        %v1150 = vshrl.u32 %v1149, 7
        %v1151 = vsub.s32 %v1148, %v1150
        %v1152 = vrot.slane %v1145, %v1151
        %v1154 = vlaneseq
        %vm1155 = vcmp.ge.s32.totalorder %v1154, 0
        %vm1156 = vcmp.lt.s32.totalorder %v1154, 512
        %vm1157 = vmand %vm1155, %vm1156
        %1158 = vst.msk [vmem:[%s285] sm:$0xf] %vm1157, %v1152
        %s1159 = sand.u32 %s182, 1
        %s1160 = scalar_lea.sflag [#allocation4], %s1159
        %s1161 = sand.u32 %s182, 1
        %s1162 = smul.addr %s1161, 4
        %s1163 = scalar_lea.vmem [#allocation3], %s1162
        // Predicated region
        $region49: #{tpu_custom_call.1} parent=47 // pred_check
          %p1164 = pneg %p192
        $region50: #{tpu_custom_call.1} parent=47 // pred_check_branch
          %1166 = sbr.rel (%p1164) target = $region52
        $region51: #{tpu_custom_call.1} parent=47 // pred_region
          %s1167 = smul.u32 4, %s22
          %s1169 = ssub.s32 64, 64
          %1170 = vsyncadd %s1160, %s1169
          %s1171 = smul.addr %s1167, 16
          %s1172 = scalar_lea.hbm %s7, %s1171
          %s1174 = sshll.u32 %s1163, 4
          %s1175 = int_to_ptr.vmem [resolvable:$true] %s1174
          %1177 = dma.vmem_to_hbm [thread:$0]  %s1175, 64, %s1172, %s1160
        $region52: #{tpu_custom_call.1} parent=47 // pred_fallthru
          _
      $region48: #{tpu_custom_call.1} parent=5 // pred_fallthru
        _
      %p1178 = scmp.le.s32.totalorder 2, %s17
      // Predicated region
      $region53: #{tpu_custom_call.1} parent=5 // pred_check
        %p1179 = pneg %p1178
      $region54: #{tpu_custom_call.1} parent=5 // pred_check_branch
        %1181 = sbr.rel (%p1179) target = $region56
      $region55: #{tpu_custom_call.1} parent=5 // pred_region
        %s1182 = ssub.s32 %s17, 2
        // Predicated region
        $region57: #{tpu_custom_call.1} parent=55 // pred_check
          %p1183 = pneg %p198
        $region58: #{tpu_custom_call.1} parent=55 // pred_check_branch
          %1185 = sbr.rel (%p1183) target = $region60
        $region59: #{tpu_custom_call.1} parent=55 // pred_region
          %s1186 = sand.u32 %s183, 1
          %s1187 = scalar_lea.sflag [#allocation4], %s1186
          %s1188 = sand.u32 %s183, 1
          %s1189 = smul.addr %s1188, 4
          %s1190 = scalar_lea.vmem [#allocation3], %s1189
          %1191 = dma.done %s1187, 64
        $region60: #{tpu_custom_call.1} parent=55 // pred_fallthru
          _
      $region56: #{tpu_custom_call.1} parent=5 // pred_fallthru
        _
    $region6: #{tpu_custom_call.1} parent=1 // loop_footer
      %s21 = sadd.s32 1, %s17
    $region7: #{tpu_custom_call.1} parent=1 // loop_footer_branch
      %16 = sbr.rel target = $region3
    $region8: #{tpu_custom_call.1} parent=1 // loop_exit
      _
    %1192 = vsyncpa [#allocation4], 1
    %s1193 = scalar_lea.sflag [#allocation4], 1
    %1194 = vsyncpa %s1193, 1

</llo_original>
